<compile_context>
chip_gen: v5e
topology: v5e:2x2
jax: 0.10.0
libtpu: 0.0.40
codegen_flags: <defaults>
</compile_context>

<pallas_src>
import functools

import jax
import jax.numpy as jnp
from jax.experimental import pallas as pl
from jax.experimental.pallas import tpu as pltpu

_EPS = 1e-12  # matches torch.nn.functional.normalize default eps


def _round_up(n, m):
    return ((n + m - 1) // m) * m


def _tpu_vmem_bytes():
    """Per-core VMEM capacity; conservative fallback if the query fails."""
    try:
        info = pltpu.get_tpu_info()
        cap = getattr(info, "vmem_capacity_bytes", None)
        if cap:
            return int(cap)
    except Exception:
        pass
    return 64 * 1024 * 1024  # v7x per-TensorCore VMEM (smallest of the three)


def _pick_tiles(B, C, D, k, w_bytes, x_bytes, out_bytes, vmem_cap):
    """Lane/sublane aligned tiles sized from this generation's VMEM."""
    # Batch tile: multiple of 8, large enough to be MXU/overhead friendly.
    TB = min(_round_up(max(B, 1), 8), 512)

    # Class tile: as wide as ~55% of VMEM allows (lane-dense unmasked stores,
    # long contiguous weight DMAs, few grid steps); the rest is headroom for
    # Mosaic internal scratch and in-kernel f32 intermediates.
    budget = int(vmem_cap * 0.55)
    fixed = 2 * TB * D * x_bytes                       # double-buffered x tile
    per_tc = (2 * k * D * w_bytes                      # double-buffered weight
              + 2 * TB * out_bytes                     # double-buffered output
              + 2 * TB * 4)                            # f32 temporaries headroom
    tc_cap = max((budget - fixed) // per_tc, 128)
    tc_cap = (tc_cap // 128) * 128
    if tc_cap >= 512:
        tc_cap = (tc_cap // 256) * 256  # 256-align for v6e/v7x 2x256^2 MXU
    TC = min(_round_up(C, 128), tc_cap, 2048)
    return TB, TC


def _subcenter_kernel(x_ref, w_ref, o_ref, *, k):
    """x_ref: (TB, D) pre-normalized; w_ref: (k, D, TC) pre-normalized;
    o_ref: (TB, TC) = max over the k sub-center cosines."""
    xn = x_ref[...]
    # k is a small static constant -> unrolled; accumulator initialized from
    # the j=0 matmul (no -inf broadcast).  f32 accumulation on the MXU.
    out = jnp.dot(xn, w_ref[0], preferred_element_type=jnp.float32)
    for j in range(1, k):
        out = jnp.maximum(
            out, jnp.dot(xn, w_ref[j], preferred_element_type=jnp.float32))
    o_ref[...] = out.astype(o_ref.dtype)


def prepare_subcenter_weight(weight, *, num_class, k,
                             compute_dtype=jnp.bfloat16):
    """Row-normalize the (num_class*k, D) weight once and persist it in the
    kernel's (k, D, num_class) layout (done per parameter update, not per
    forward)."""
    rows, D = weight.shape
    assert rows == num_class * k
    w32 = weight.astype(jnp.float32)
    inv = jax.lax.rsqrt(
        jnp.maximum(jnp.sum(w32 * w32, axis=1, keepdims=True), _EPS * _EPS))
    wn = (w32 * inv).astype(compute_dtype)
    # Row c*k + j of `weight` is sub-center j of class c (matches torch's
    # cosine.view(-1, num_class, k)).
    return wn.reshape(num_class, k, D).transpose(1, 2, 0)  # (k, D, C)


def subcenter_head_apply(x, w_kdc, *, out_dtype=jnp.float32):
    """x: (B, feat_dim); w_kdc: (k, feat_dim, num_class) pre-normalized.
    Returns (B, num_class) max-over-subcenters cosine."""
    k, D, C = w_kdc.shape
    B, Dx = x.shape
    assert Dx == D
    compute_dtype = w_kdc.dtype

    # ---- wrapper-side prep (plain JAX; fuses under jit) -------------------
    # Hoist x L2-normalization out of the kernel: done once per batch instead
    # of once per class tile, and the streamed x tile is already bf16.
    x32 = x.astype(jnp.float32)
    x_inv = jax.lax.rsqrt(
        jnp.maximum(jnp.sum(x32 * x32, axis=1, keepdims=True), _EPS * _EPS))
    xn = (x32 * x_inv).astype(compute_dtype)

    w_bytes = jnp.dtype(compute_dtype).itemsize
    x_bytes = w_bytes
    out_bytes = jnp.dtype(out_dtype).itemsize

    vmem_cap = _tpu_vmem_bytes()
    TB, TC = _pick_tiles(B, C, D, k, w_bytes, x_bytes, out_bytes, vmem_cap)
    Bp, Cp = _round_up(B, TB), _round_up(C, TC)

    xn_p = xn if Bp == B else jnp.pad(xn, ((0, Bp - B), (0, 0)))
    w_p = w_kdc if Cp == C else jnp.pad(w_kdc, ((0, 0), (0, 0), (0, Cp - C)))

    # Class axis OUTER (weight block index changes slowest -> streamed from
    # HBM once, and megacore shards classes); batch axis INNER.
    grid = (Cp // TC, Bp // TB)
    n_ctiles = grid[0]

    # Explicit scoped-VMEM limit sized to the actual pipeline buffers (+
    # headroom), capped below this generation's physical VMEM.
    need = (2 * k * D * TC * w_bytes
            + 2 * TB * D * x_bytes
            + 2 * TB * TC * out_bytes
            + 2 * TB * TC * 4
            + (4 << 20))
    vmem_limit = int(min(max(need, 32 << 20), vmem_cap * 0.9))

    cost = pl.CostEstimate(
        flops=2 * Bp * Cp * k * D,
        transcendentals=0,
        bytes_accessed=(xn_p.size * x_bytes * n_ctiles   # x re-read per C tile
                        + w_p.size * w_bytes             # weight read once
                        + Bp * Cp * out_bytes),          # output written once
    )

    out_padded = pl.pallas_call(
        functools.partial(_subcenter_kernel, k=k),
        out_shape=jax.ShapeDtypeStruct((Bp, Cp), out_dtype),
        grid=grid,
        in_specs=[
            # x tile cycles on the inner (batch) axis: small, cheap re-reads.
            pl.BlockSpec((TB, D), lambda cj, bi: (bi, 0)),
            # Weight tile only changes on the outer (class) axis: stays
            # resident in VMEM across all inner batch tiles.
            pl.BlockSpec((k, D, TC), lambda cj, bi: (0, 0, cj)),
        ],
        out_specs=pl.BlockSpec((TB, TC), lambda cj, bi: (bi, cj)),
        compiler_params=pltpu.CompilerParams(
            dimension_semantics=("parallel", "arbitrary"),
            vmem_limit_bytes=vmem_limit),
        cost_estimate=cost,
    )(xn_p, w_p)
    return out_padded[:B, :C]


def subcenter_head(x, weight, *, num_class, k,
                   compute_dtype=jnp.bfloat16, out_dtype=jnp.float32):
    """Convenience wrapper: prepare the weight and apply in one call.
    For a real model, call prepare_subcenter_weight() once and reuse."""
    w_kdc = prepare_subcenter_weight(
        weight, num_class=num_class, k=k, compute_dtype=compute_dtype)
    return subcenter_head_apply(x, w_kdc, out_dtype=out_dtype)


def _reference(x, weight, num_class, k):
    xn = x / jnp.maximum(jnp.linalg.norm(x, axis=1, keepdims=True), _EPS)
    wn = weight / jnp.maximum(jnp.linalg.norm(weight, axis=1, keepdims=True), _EPS)
    cos = xn @ wn.T
    return jnp.max(cos.reshape(x.shape[0], num_class, k), axis=2)


if __name__ == "__main__":
    # Small shapes consistent with the module: a batch of feature vectors.
    B, FEAT_DIM, NUM_CLASS, K = 8, 32, 16, 3

    key = jax.random.PRNGKey(0)
    kx, kw = jax.random.split(key)

    x = jax.random.normal(kx, (B, FEAT_DIM), dtype=jnp.float32)

    # Deterministic parameter init mirroring reset_parameters():
    # uniform(-1, 1) followed by row-wise L2 normalization.
    w_raw = jax.random.uniform(kw, (NUM_CLASS * K, FEAT_DIM),
                               minval=-1.0, maxval=1.0, dtype=jnp.float32)
    w = w_raw / jnp.maximum(jnp.linalg.norm(w_raw, axis=1, keepdims=True), _EPS)

    ref = _reference(x, w, NUM_CLASS, K)

    # Fast path: weight prepared once (persisted layout), bf16 MXU operands
    # with f32 accumulation (cosines are in [-1, 1]).
    w_kdc_bf16 = prepare_subcenter_weight(
        w, num_class=NUM_CLASS, k=K, compute_dtype=jnp.bfloat16)
    out_bf16 = jax.block_until_ready(subcenter_head_apply(x, w_kdc_bf16))
    assert out_bf16.shape == (B, NUM_CLASS)
    assert out_bf16.dtype == jnp.float32
    assert jnp.allclose(out_bf16, ref, atol=5e-3, rtol=0)

    # f32 compute path: exact-tolerance check against the f32 reference.
    out_f32 = jax.block_until_ready(
        subcenter_head(x, w, num_class=NUM_CLASS, k=K,
                       compute_dtype=jnp.float32))
    assert jnp.allclose(out_f32, ref, atol=1e-5, rtol=1e-5)

    print("KERNEL_OK")
</pallas_src>

<mosaic_0001>
module attributes {stable_mosaic.version = 11 : i64} {
  func.func @_subcenter_kernel(%arg0: i32, %arg1: i32, %arg2: memref<8x32xbf16, #tpu.memory_space<vmem>>, %arg3: memref<3x32x128xbf16, #tpu.memory_space<vmem>>, %arg4: memref<8x128xf32, #tpu.memory_space<vmem>>) attributes {dimension_semantics = [#tpu.dimension_semantics<parallel>, #tpu.dimension_semantics<arbitrary>], iteration_bounds = array<i64: 1, 1>, scalar_prefetch = 0 : i64, scratch_operands = 0 : i64, tpu.core_type = #tpu.core_type<tc>, window_params = [{transform_indices = @transform_0, window_bounds = array<i64: 8, 32>}, {transform_indices = @transform_1, window_bounds = array<i64: 3, 32, 128>}, {transform_indices = @transform_2, window_bounds = array<i64: 8, 128>}]} {
    %c0 = arith.constant 0 : index
    %c0_0 = arith.constant 0 : index
    %0 = vector.load %arg2[%c0, %c0_0] : memref<8x32xbf16, #tpu.memory_space<vmem>>, vector<8x32xbf16>
    %c0_1 = arith.constant 0 : index
    %c0_2 = arith.constant 0 : index
    %c0_3 = arith.constant 0 : index
    %1 = vector.load %arg3[%c0_1, %c0_2, %c0_3] : memref<3x32x128xbf16, #tpu.memory_space<vmem>>, vector<1x32x128xbf16>
    %2 = vector.shape_cast %1 : vector<1x32x128xbf16> to vector<32x128xbf16>
    %cst = arith.constant dense<0.000000e+00> : vector<8x128xf32>
    %3 = tpu.matmul %0, %2, %cst {dimension_numbers = #tpu.dot_dimension_numbers<[1], [0], [0], [1], [0, 0, 1, 1], [], []>} : vector<8x32xbf16>, vector<32x128xbf16>, vector<8x128xf32> -> vector<8x128xf32>
    %c1 = arith.constant 1 : index
    %c0_4 = arith.constant 0 : index
    %c0_5 = arith.constant 0 : index
    %4 = vector.load %arg3[%c1, %c0_4, %c0_5] : memref<3x32x128xbf16, #tpu.memory_space<vmem>>, vector<1x32x128xbf16>
    %5 = vector.shape_cast %4 : vector<1x32x128xbf16> to vector<32x128xbf16>
    %cst_6 = arith.constant dense<0.000000e+00> : vector<8x128xf32>
    %6 = tpu.matmul %0, %5, %cst_6 {dimension_numbers = #tpu.dot_dimension_numbers<[1], [0], [0], [1], [0, 0, 1, 1], [], []>} : vector<8x32xbf16>, vector<32x128xbf16>, vector<8x128xf32> -> vector<8x128xf32>
    %7 = arith.maximumf %3, %6 : vector<8x128xf32>
    %c2 = arith.constant 2 : index
    %c0_7 = arith.constant 0 : index
    %c0_8 = arith.constant 0 : index
    %8 = vector.load %arg3[%c2, %c0_7, %c0_8] : memref<3x32x128xbf16, #tpu.memory_space<vmem>>, vector<1x32x128xbf16>
    %9 = vector.shape_cast %8 : vector<1x32x128xbf16> to vector<32x128xbf16>
    %cst_9 = arith.constant dense<0.000000e+00> : vector<8x128xf32>
    %10 = tpu.matmul %0, %9, %cst_9 {dimension_numbers = #tpu.dot_dimension_numbers<[1], [0], [0], [1], [0, 0, 1, 1], [], []>} : vector<8x32xbf16>, vector<32x128xbf16>, vector<8x128xf32> -> vector<8x128xf32>
    %11 = arith.maximumf %7, %10 : vector<8x128xf32>
    %c0_10 = arith.constant 0 : index
    %c0_11 = arith.constant 0 : index
    %12 = vector.load %arg4[%c0_10, %c0_11] : memref<8x128xf32, #tpu.memory_space<vmem>>, vector<8x128xf32>
    tpu.vector_store %arg4[%c0_10, %c0_11], %11 {strides = array<i32>} : memref<8x128xf32, #tpu.memory_space<vmem>>, vector<8x128xf32>,
    return
  }
  func.func @transform_0(%arg0: i32, %arg1: i32) -> (i32, i32) {
    %c0_i32 = arith.constant 0 : i32
    %c0_i32_0 = arith.constant 0 : i32
    return %arg1, %c0_i32 : i32, i32
  }
  func.func @transform_1(%arg0: i32, %arg1: i32) -> (i32, i32, i32) {
    %c0_i32 = arith.constant 0 : i32
    %c0_i32_0 = arith.constant 0 : i32
    %c0_i32_1 = arith.constant 0 : i32
    return %c0_i32, %c0_i32_0, %arg0 : i32, i32, i32
  }
  func.func @transform_2(%arg0: i32, %arg1: i32) -> (i32, i32) {
    %c0_i32 = arith.constant 0 : i32
    return %arg1, %arg0 : i32, i32
  }
}

</mosaic_0001>

<llo_original>
// kernel: tpu_custom_call.1
$region0: #{tpu_custom_call.1}
  #allocation0 [shape = 'u32[]', space=smem, size = 0x4, offset = 0x4, fixed_abs, tag = 'smem constant byte address 0x4 - core index']
  #allocation1 [shape = 'u32[72,128]{1,0:T(1,128)}', space=vmem, size = 0x9000, scoped, tag = 'internal scratch']
  %s0 = inlined_call_operand.hbm [shape: bf16[8,32], index: 0, kind: input, shape index: {}]
  %s1 = inlined_call_operand.hbm [shape: bf16[3,32,128], index: 1, kind: input, shape index: {}]
  %s2 = inlined_call_operand.hbm [shape: f32[8,128], index: 2, kind: output, shape index: {}]
  %s3 = sld [smem:[#allocation0]]
  $region26: #{tpu_custom_call.1} parent=0
    _
  %s5 = ssub.s32 1, %s3
  %s6 = scalar_select 0, %s5, %s3
  $region1: #{tpu_custom_call.1} parent=0
    #allocation2 [shape = 'u8[2048]{0}', space=vmem, size = 0x800, scoped, tag = 'input window, operand 0, single buffered']
    #allocation3 [shape = 's32[1]{0}', space=sflag, size = 0x4, scoped, tag = 'scoped memory for tpu_custom_call.1']
    #allocation4 [shape = 's32[1]{0}', space=sflag, size = 0x4, scoped, tag = 'scoped memory for tpu_custom_call.1']
    #allocation5 [shape = 'u8[24576]{0}', space=vmem, size = 0x6000, scoped, tag = 'input window, operand 1, single buffered']
    #allocation6 [shape = 's32[1]{0}', space=sflag, size = 0x4, scoped, tag = 'scoped memory for tpu_custom_call.1']
    #allocation7 [shape = 'u8[4096]{0}', space=vmem, size = 0x1000, scoped, tag = 'output window, operand 0, single buffered']
    %7 = vsyncpa [#allocation3], 0
    %8 = vsyncpa [#allocation6], 0
    %9 = vsyncpa [#allocation4], 0
    // Predicated region
    $region2: #{tpu_custom_call.1} parent=1 // pred_check
      _
    $region3: #{tpu_custom_call.1} parent=1 // pred_check_branch
      %11 = sbr.rel (0) target = $region5
    $region4: #{tpu_custom_call.1} parent=1 // pred_region
      %13 = vsyncadd [#allocation3], 0
      %s15 = sshll.u32 %s0, 4
      %s16 = int_to_ptr.hbm [resolvable:$true] %s15
      %s17 = sshll.u32 [#allocation2], 4
      %s18 = int_to_ptr.vmem [resolvable:$true] %s17
      %20 = dma.hbm_to_vmem [thread:$0]  %s16, 64, %s18, [#allocation3]
    $region5: #{tpu_custom_call.1} parent=1 // pred_fallthru
      _
    // Predicated region
    $region6: #{tpu_custom_call.1} parent=1 // pred_check
      _
    $region7: #{tpu_custom_call.1} parent=1 // pred_check_branch
      %22 = sbr.rel (0) target = $region9
    $region8: #{tpu_custom_call.1} parent=1 // pred_region
      %24 = vsyncadd [#allocation6], 0
      %s25 = sshll.u32 %s1, 4
      %s26 = int_to_ptr.hbm [resolvable:$true] %s25
      %s27 = sshll.u32 [#allocation5], 4
      %s28 = int_to_ptr.vmem [resolvable:$true] %s27
      %33 = dma.hbm_to_vmem [thread:$0]  %s26, 768, %s28, [#allocation6], 64, 64, 4
    $region9: #{tpu_custom_call.1} parent=1 // pred_fallthru
      _
    // Predicated region
    $region10: #{tpu_custom_call.1} parent=1 // pred_check
      _
    $region11: #{tpu_custom_call.1} parent=1 // pred_check_branch
      %35 = sbr.rel (0) target = $region13
    $region12: #{tpu_custom_call.1} parent=1 // pred_region
      %37 = dma.done [#allocation3], 64
    $region13: #{tpu_custom_call.1} parent=1 // pred_fallthru
      _
    // Predicated region
    $region14: #{tpu_custom_call.1} parent=1 // pred_check
      _
    $region15: #{tpu_custom_call.1} parent=1 // pred_check_branch
      %39 = sbr.rel (0) target = $region17
    $region16: #{tpu_custom_call.1} parent=1 // pred_region
      %41 = dma.done [#allocation6], 768
    $region17: #{tpu_custom_call.1} parent=1 // pred_fallthru
      _
    %v43 = vld [vmem:[#allocation2] sm:$0xf]
    %v44 = vld [vmem:[#allocation5] sm:$0xf]
    %v45 = vld [vmem:[#allocation5 + $0x4] sm:$0xf]
    %v46 = vld [vmem:[#allocation5 + $0x8] sm:$0xf]
    %v47 = vld [vmem:[#allocation5 + $0xc] sm:$0xf]
    %v52 = vunpack.c.l.b16 %v44
    %v53 = vunpack.c.l.b16 %v45
    %v54 = vunpack.c.l.b16 %v46
    %v55 = vunpack.c.l.b16 %v47
    %v56 = vpack.c.b16 %v53, %v52
    %v57 = vpack.c.b16 %v55, %v54
    %vm60 = vcmask 261120
    %v62 = vsel %vm60, %v43, 0
    %64 = vmatpush.bf16.msra.mxu0 0
    %65 = vmatpush.bf16.msra.mxu0 0
    %66 = vmatpush.bf16.msra.mxu0 0
    %67 = vmatpush.bf16.msra.mxu0 0
    %68 = vmatpush.bf16.msra.mxu0 0
    %69 = vmatpush.bf16.msra.mxu0 0
    %70 = vmatpush.bf16.msra.mxu0 %v57
    %71 = vmatpush.bf16.msra.mxu0 %v56
    %72 = vmatmul.bf16.gmra.mxu0 %v62
    %v73 = vpop.f32.mrf.mxu0
    %v74 = vadd.f32 0.0, %v73
    %v75 = vpop.f32.mrf.mxu0
    %76 = vdwg.mxu0
    %s77 = scalar_lea.vmem [#allocation5], 16
    %v78 = vld [vmem:[%s77] sm:$0xf]
    %v79 = vld [vmem:[%s77 + $0x4] sm:$0xf]
    %v80 = vld [vmem:[%s77 + $0x8] sm:$0xf]
    %v81 = vld [vmem:[%s77 + $0xc] sm:$0xf]
    %v86 = vunpack.c.l.b16 %v78
    %v87 = vunpack.c.l.b16 %v79
    %v88 = vunpack.c.l.b16 %v80
    %v89 = vunpack.c.l.b16 %v81
    %v90 = vpack.c.b16 %v87, %v86
    %v91 = vpack.c.b16 %v89, %v88
    %94 = vmatpush.bf16.msra.mxu0 0
    %95 = vmatpush.bf16.msra.mxu0 0
    %96 = vmatpush.bf16.msra.mxu0 0
    %97 = vmatpush.bf16.msra.mxu0 0
    %98 = vmatpush.bf16.msra.mxu0 0
    %99 = vmatpush.bf16.msra.mxu0 0
    %100 = vmatpush.bf16.msra.mxu0 %v91
    %101 = vmatpush.bf16.msra.mxu0 %v90
    %102 = vmatmul.bf16.gmra.mxu0 %v62
    %v103 = vpop.f32.mrf.mxu0
    %v104 = vadd.f32 0.0, %v103
    %v105 = vpop.f32.mrf.mxu0
    %106 = vdwg.mxu0
    %v107 = vmax.f32 %v74, %v104
    %s108 = scalar_lea.vmem [#allocation5], 32
    %v109 = vld [vmem:[%s108] sm:$0xf]
    %v110 = vld [vmem:[%s108 + $0x4] sm:$0xf]
    %v111 = vld [vmem:[%s108 + $0x8] sm:$0xf]
    %v112 = vld [vmem:[%s108 + $0xc] sm:$0xf]
    %v117 = vunpack.c.l.b16 %v109
    %v118 = vunpack.c.l.b16 %v110
    %v119 = vunpack.c.l.b16 %v111
    %v120 = vunpack.c.l.b16 %v112
    %v121 = vpack.c.b16 %v118, %v117
    %v122 = vpack.c.b16 %v120, %v119
    %125 = vmatpush.bf16.msra.mxu0 0
    %126 = vmatpush.bf16.msra.mxu0 0
    %127 = vmatpush.bf16.msra.mxu0 0
    %128 = vmatpush.bf16.msra.mxu0 0
    %129 = vmatpush.bf16.msra.mxu0 0
    %130 = vmatpush.bf16.msra.mxu0 0
    %131 = vmatpush.bf16.msra.mxu0 %v122
    %132 = vmatpush.bf16.msra.mxu0 %v121
    %133 = vmatmul.bf16.gmra.mxu0 %v62
    %v134 = vpop.f32.mrf.mxu0
    %v135 = vadd.f32 0.0, %v134
    %v136 = vpop.f32.mrf.mxu0
    %137 = vdwg.mxu0
    %v138 = vmax.f32 %v107, %v135
    %139 = vst [vmem:[#allocation7] sm:$0xff] %v138
    // Predicated region
    $region18: #{tpu_custom_call.1} parent=1 // pred_check
      _
    $region19: #{tpu_custom_call.1} parent=1 // pred_check_branch
      %141 = sbr.rel (0) target = $region21
    $region20: #{tpu_custom_call.1} parent=1 // pred_region
      %143 = vsyncadd [#allocation4], 0
      %s145 = sshll.u32 [#allocation7], 4
      %s146 = int_to_ptr.vmem [resolvable:$true] %s145
      %s147 = sshll.u32 %s2, 4
      %s148 = int_to_ptr.hbm [resolvable:$true] %s147
      %150 = dma.vmem_to_hbm [thread:$0]  %s146, 128, %s148, [#allocation4]
    $region21: #{tpu_custom_call.1} parent=1 // pred_fallthru
      _
    // Predicated region
    $region22: #{tpu_custom_call.1} parent=1 // pred_check
      _
    $region23: #{tpu_custom_call.1} parent=1 // pred_check_branch
      %152 = sbr.rel (0) target = $region25
    $region24: #{tpu_custom_call.1} parent=1 // pred_region
      %154 = dma.done [#allocation4], 128
    $region25: #{tpu_custom_call.1} parent=1 // pred_fallthru
      _
    %155 = vsyncpa [#allocation3], 1
    %156 = vsyncpa [#allocation6], 1
    %157 = vsyncpa [#allocation4], 1

</llo_original>
